<compile_context>
chip_gen: v7x
topology: tpu7x:2x2x1
jax: 0.10.0
libtpu: 0.0.40
codegen_flags: <defaults>
</compile_context>

<pallas_src>
import math

import jax
import jax.numpy as jnp
from jax.experimental import pallas as pl
from jax.experimental.pallas import tpu as pltpu


_SQRT_HALF = 0.7071067811865476


def _erf_approx(z):
    # Abramowitz & Stegun 7.1.26 rational approximation, |err| <= 1.5e-7.
    # Built only from VPU/EUP ops (mul/add/div/exp/where) so it lowers on all TPU gens
    # without relying on a lax.erf lowering rule in Mosaic.
    a1, a2, a3, a4, a5 = 0.254829592, -0.284496736, 1.421413741, -1.453152027, 1.061405429
    p = 0.3275911
    az = jnp.abs(z)
    t = 1.0 / (1.0 + p * az)
    poly = ((((a5 * t + a4) * t + a3) * t + a2) * t + a1) * t
    y = 1.0 - poly * jnp.exp(-az * az)
    return jnp.where(z >= 0, y, -y)


def _gelu_exact(x):
    # torch.nn.GELU() default (erf-based, not the tanh approximation).
    return 0.5 * x * (1.0 + _erf_approx(x * _SQRT_HALF))


def _ffn_kernel(x_ref, w1_ref, b1_ref, w2_ref, b2_ref, out_ref):
    # x_ref:  (tile_m, d_model)
    # w1_ref: (d_model, d_ff)   (transposed vs torch Linear.weight)
    # b1_ref: (1, d_ff)
    # w2_ref: (d_ff, d_model)
    # b2_ref: (1, d_model)
    # out_ref:(tile_m, d_model)
    x = x_ref[...]
    h = jnp.dot(x, w1_ref[...], preferred_element_type=jnp.float32) + b1_ref[...]
    h = _gelu_exact(h)
    h = h.astype(w2_ref.dtype)  # back to bf16 operands if requested; accumulation stays f32
    y = jnp.dot(h, w2_ref[...], preferred_element_type=jnp.float32) + b2_ref[...]
    out_ref[...] = y.astype(out_ref.dtype)


def feed_forward(x, w1, b1, w2, b2, *, tile_m=256, compute_dtype=None):
    """Fused FFN forward: layer2(gelu(layer1(x))), dropout = identity (inference).

    x:  (..., d_model)
    w1: (d_ff, d_model)   torch nn.Linear(d_model, d_ff).weight layout
    b1: (d_ff,)
    w2: (d_model, d_ff)   torch nn.Linear(d_ff, d_model).weight layout
    b2: (d_model,)
    compute_dtype: e.g. jnp.bfloat16 on v6e/v7x for MXU throughput (f32 accumulation kept).
    """
    orig_shape = x.shape
    out_dtype = x.dtype
    d_model = x.shape[-1]
    d_ff = w1.shape[0]
    assert w1.shape == (d_ff, d_model), w1.shape
    assert w2.shape == (d_model, d_ff), w2.shape
    # Lane-dense requirement: keeps every load/store a full-width vst (no masked lanes).
    assert d_model % 128 == 0 and d_ff % 128 == 0, "d_model/d_ff must be multiples of 128"

    M = math.prod(orig_shape[:-1]) if len(orig_shape) > 1 else 1
    x2 = x.reshape(M, d_model)

    w1t = w1.T  # (d_model, d_ff)
    w2t = w2.T  # (d_ff, d_model)
    if compute_dtype is not None:
        x2 = x2.astype(compute_dtype)
        w1t = w1t.astype(compute_dtype)
        w2t = w2t.astype(compute_dtype)
    b1r = b1.reshape(1, d_ff).astype(jnp.float32)
    b2r = b2.reshape(1, d_model).astype(jnp.float32)

    # Pad flattened M to a sublane multiple, then to a multiple of the chosen M tile.
    m_pad = -(-M // 8) * 8
    tile = min(tile_m, m_pad)
    m_pad = -(-m_pad // tile) * tile
    if m_pad != M:
        x2 = jnp.pad(x2, ((0, m_pad - M), (0, 0)))

    grid = (m_pad // tile,)

    out = pl.pallas_call(
        _ffn_kernel,
        out_shape=jax.ShapeDtypeStruct((m_pad, d_model), out_dtype),
        grid_spec=pl.GridSpec(
            grid=grid,
            in_specs=[
                pl.BlockSpec((tile, d_model), lambda i: (i, 0)),     # activations stream
                pl.BlockSpec((d_model, d_ff), lambda i: (0, 0)),     # W1 resident
                pl.BlockSpec((1, d_ff), lambda i: (0, 0)),           # b1 resident
                pl.BlockSpec((d_ff, d_model), lambda i: (0, 0)),     # W2 resident
                pl.BlockSpec((1, d_model), lambda i: (0, 0)),        # b2 resident
            ],
            out_specs=pl.BlockSpec((tile, d_model), lambda i: (i, 0)),
        ),
        compiler_params=pltpu.CompilerParams(
            dimension_semantics=("parallel",)),  # v7x: 2 TCs split the M tiles
    )(x2, w1t, b1r, w2t, b2r)

    return out[:M].reshape(orig_shape)


def _reference(x, w1, b1, w2, b2):
    hi = jax.lax.Precision.HIGHEST
    h = jnp.matmul(x, w1.T, precision=hi) + b1
    h = jax.nn.gelu(h, approximate=False)          # exact erf GELU, like torch nn.GELU()
    return jnp.matmul(h, w2.T, precision=hi) + b2


if __name__ == "__main__":
    # Small shapes consistent with the module (keeps the 1:4 d_model:d_ff ratio, and
    # 128-multiple feature dims so the kernel's lane-dense layout is exercised).
    B, S = 2, 10
    d_model, d_ff = 128, 512

    key = jax.random.PRNGKey(0)
    kx, kw1, kb1, kw2, kb2 = jax.random.split(key, 5)
    x = jax.random.normal(kx, (B, S, d_model), dtype=jnp.float32)
    w1 = jax.random.normal(kw1, (d_ff, d_model), dtype=jnp.float32) * 0.05
    b1 = jax.random.normal(kb1, (d_ff,), dtype=jnp.float32) * 0.05
    w2 = jax.random.normal(kw2, (d_model, d_ff), dtype=jnp.float32) * 0.05
    b2 = jax.random.normal(kb2, (d_model,), dtype=jnp.float32) * 0.05

    ref = _reference(x, w1, b1, w2, b2)

    # f32 path (single M tile)
    out = feed_forward(x, w1, b1, w2, b2)
    out = jax.block_until_ready(out)
    assert out.shape == x.shape, out.shape
    assert jnp.allclose(out, ref, atol=1e-4, rtol=1e-4), "f32 kernel mismatch vs reference"

    # Multi-tile path (forces grid > 1 plus M padding/slicing)
    out_tiled = feed_forward(x, w1, b1, w2, b2, tile_m=8)
    out_tiled = jax.block_until_ready(out_tiled)
    assert jnp.allclose(out_tiled, ref, atol=1e-4, rtol=1e-4), "tiled kernel mismatch"

    # bf16-operand path (v6e/v7x recommendation) — looser tolerance, f32 accumulation
    out_bf16 = feed_forward(x, w1, b1, w2, b2, compute_dtype=jnp.bfloat16)
    out_bf16 = jax.block_until_ready(out_bf16)
    assert jnp.allclose(out_bf16, ref, atol=5e-2, rtol=5e-2), "bf16 kernel mismatch"

    print("KERNEL_OK")
</pallas_src>

<mosaic_0001>
module attributes {stable_mosaic.version = 11 : i64} {
  func.func @_ffn_kernel(%arg0: i32, %arg1: memref<24x128xf32, #tpu.memory_space<vmem>>, %arg2: memref<128x512xf32, #tpu.memory_space<vmem>>, %arg3: memref<1x512xf32, #tpu.memory_space<vmem>>, %arg4: memref<512x128xf32, #tpu.memory_space<vmem>>, %arg5: memref<1x128xf32, #tpu.memory_space<vmem>>, %arg6: memref<24x128xf32, #tpu.memory_space<vmem>>) attributes {dimension_semantics = [#tpu.dimension_semantics<parallel>], iteration_bounds = array<i64: 1>, scalar_prefetch = 0 : i64, scratch_operands = 0 : i64, tpu.core_type = #tpu.core_type<tc>, window_params = [{transform_indices = @transform_0, window_bounds = array<i64: 24, 128>}, {pipeline_mode = #tpu.pipeline_mode<synchronous>, transform_indices = @transform_1, window_bounds = array<i64: 128, 512>}, {pipeline_mode = #tpu.pipeline_mode<synchronous>, transform_indices = @transform_2, window_bounds = array<i64: 1, 512>}, {pipeline_mode = #tpu.pipeline_mode<synchronous>, transform_indices = @transform_3, window_bounds = array<i64: 512, 128>}, {pipeline_mode = #tpu.pipeline_mode<synchronous>, transform_indices = @transform_4, window_bounds = array<i64: 1, 128>}, {transform_indices = @transform_5, window_bounds = array<i64: 24, 128>}]} {
    %c0 = arith.constant 0 : index
    %c0_0 = arith.constant 0 : index
    %0 = vector.load %arg1[%c0, %c0_0] : memref<24x128xf32, #tpu.memory_space<vmem>>, vector<24x128xf32>
    %c0_1 = arith.constant 0 : index
    %c0_2 = arith.constant 0 : index
    %1 = vector.load %arg2[%c0_1, %c0_2] : memref<128x512xf32, #tpu.memory_space<vmem>>, vector<128x512xf32>
    %cst = arith.constant dense<0.000000e+00> : vector<24x512xf32>
    %2 = tpu.matmul %0, %1, %cst {dimension_numbers = #tpu.dot_dimension_numbers<[1], [0], [0], [1], [0, 0, 1, 1], [], []>} : vector<24x128xf32>, vector<128x512xf32>, vector<24x512xf32> -> vector<24x512xf32>
    %c0_3 = arith.constant 0 : index
    %c0_4 = arith.constant 0 : index
    %3 = vector.load %arg3[%c0_3, %c0_4] : memref<1x512xf32, #tpu.memory_space<vmem>>, vector<1x512xf32>
    %4 = vector.broadcast %3 : vector<1x512xf32> to vector<24x512xf32>
    %5 = arith.addf %2, %4 : vector<24x512xf32>
    %cst_5 = arith.constant 5.000000e-01 : f32
    %6 = vector.broadcast %cst_5 : f32 to vector<24x512xf32>
    %7 = arith.mulf %6, %5 : vector<24x512xf32>
    %cst_6 = arith.constant 0.707106769 : f32
    %8 = vector.broadcast %cst_6 : f32 to vector<24x512xf32>
    %9 = arith.mulf %5, %8 : vector<24x512xf32>
    %10 = math.absf %9 : vector<24x512xf32>
    %cst_7 = arith.constant 0.327591091 : f32
    %11 = vector.broadcast %cst_7 : f32 to vector<24x512xf32>
    %12 = arith.mulf %11, %10 : vector<24x512xf32>
    %cst_8 = arith.constant 1.000000e+00 : f32
    %13 = vector.broadcast %cst_8 : f32 to vector<24x512xf32>
    %14 = arith.addf %13, %12 : vector<24x512xf32>
    %cst_9 = arith.constant 1.000000e+00 : f32
    %15 = vector.broadcast %cst_9 : f32 to vector<24x512xf32>
    %16 = arith.divf %15, %14 : vector<24x512xf32>
    %cst_10 = arith.constant 1.06140542 : f32
    %17 = vector.broadcast %cst_10 : f32 to vector<24x512xf32>
    %18 = arith.mulf %17, %16 : vector<24x512xf32>
    %cst_11 = arith.constant -1.45315206 : f32
    %19 = vector.broadcast %cst_11 : f32 to vector<24x512xf32>
    %20 = arith.addf %18, %19 : vector<24x512xf32>
    %21 = arith.mulf %20, %16 : vector<24x512xf32>
    %cst_12 = arith.constant 1.42141378 : f32
    %22 = vector.broadcast %cst_12 : f32 to vector<24x512xf32>
    %23 = arith.addf %21, %22 : vector<24x512xf32>
    %24 = arith.mulf %23, %16 : vector<24x512xf32>
    %cst_13 = arith.constant -0.284496725 : f32
    %25 = vector.broadcast %cst_13 : f32 to vector<24x512xf32>
    %26 = arith.addf %24, %25 : vector<24x512xf32>
    %27 = arith.mulf %26, %16 : vector<24x512xf32>
    %cst_14 = arith.constant 0.254829586 : f32
    %28 = vector.broadcast %cst_14 : f32 to vector<24x512xf32>
    %29 = arith.addf %27, %28 : vector<24x512xf32>
    %30 = arith.mulf %29, %16 : vector<24x512xf32>
    %cst_15 = arith.constant 0.000000e+00 : f32
    %31 = vector.broadcast %cst_15 : f32 to vector<24x512xf32>
    %32 = arith.subf %31, %10 : vector<24x512xf32>
    %33 = arith.mulf %32, %10 : vector<24x512xf32>
    %34 = math.exp %33 : vector<24x512xf32>
    %35 = arith.mulf %30, %34 : vector<24x512xf32>
    %cst_16 = arith.constant 1.000000e+00 : f32
    %36 = vector.broadcast %cst_16 : f32 to vector<24x512xf32>
    %37 = arith.subf %36, %35 : vector<24x512xf32>
    %cst_17 = arith.constant 0.000000e+00 : f32
    %38 = vector.broadcast %cst_17 : f32 to vector<24x512xf32>
    %39 = arith.cmpf oge, %9, %38 : vector<24x512xf32>
    %cst_18 = arith.constant 0.000000e+00 : f32
    %40 = vector.broadcast %cst_18 : f32 to vector<24x512xf32>
    %41 = arith.subf %40, %37 : vector<24x512xf32>
    %42 = arith.select %39, %37, %41 : vector<24x512xi1>, vector<24x512xf32>
    %cst_19 = arith.constant 1.000000e+00 : f32
    %43 = vector.broadcast %cst_19 : f32 to vector<24x512xf32>
    %44 = arith.addf %43, %42 : vector<24x512xf32>
    %45 = arith.mulf %7, %44 : vector<24x512xf32>
    %c0_20 = arith.constant 0 : index
    %c0_21 = arith.constant 0 : index
    %46 = vector.load %arg4[%c0_20, %c0_21] : memref<512x128xf32, #tpu.memory_space<vmem>>, vector<512x128xf32>
    %cst_22 = arith.constant dense<0.000000e+00> : vector<24x128xf32>
    %47 = tpu.matmul %45, %46, %cst_22 {dimension_numbers = #tpu.dot_dimension_numbers<[1], [0], [0], [1], [0, 0, 1, 1], [], []>} : vector<24x512xf32>, vector<512x128xf32>, vector<24x128xf32> -> vector<24x128xf32>
    %c0_23 = arith.constant 0 : index
    %c0_24 = arith.constant 0 : index
    %48 = vector.load %arg5[%c0_23, %c0_24] : memref<1x128xf32, #tpu.memory_space<vmem>>, vector<1x128xf32>
    %49 = vector.broadcast %48 : vector<1x128xf32> to vector<24x128xf32>
    %50 = arith.addf %47, %49 : vector<24x128xf32>
    %c0_25 = arith.constant 0 : index
    %c0_26 = arith.constant 0 : index
    %51 = vector.load %arg6[%c0_25, %c0_26] : memref<24x128xf32, #tpu.memory_space<vmem>>, vector<24x128xf32>
    tpu.vector_store %arg6[%c0_25, %c0_26], %50 {strides = array<i32>} : memref<24x128xf32, #tpu.memory_space<vmem>>, vector<24x128xf32>,
    return
  }
  func.func @transform_0(%arg0: i32) -> (i32, i32) {
    %c0_i32 = arith.constant 0 : i32
    %c0_i32_0 = arith.constant 0 : i32
    return %arg0, %c0_i32 : i32, i32
  }
  func.func @transform_1(%arg0: i32) -> (i32, i32) {
    %c0_i32 = arith.constant 0 : i32
    %c0_i32_0 = arith.constant 0 : i32
    %c0_i32_1 = arith.constant 0 : i32
    return %c0_i32, %c0_i32_0 : i32, i32
  }
  func.func @transform_2(%arg0: i32) -> (i32, i32) {
    %c0_i32 = arith.constant 0 : i32
    %c0_i32_0 = arith.constant 0 : i32
    %c0_i32_1 = arith.constant 0 : i32
    return %c0_i32, %c0_i32_0 : i32, i32
  }
  func.func @transform_3(%arg0: i32) -> (i32, i32) {
    %c0_i32 = arith.constant 0 : i32
    %c0_i32_0 = arith.constant 0 : i32
    %c0_i32_1 = arith.constant 0 : i32
    return %c0_i32, %c0_i32_0 : i32, i32
  }
  func.func @transform_4(%arg0: i32) -> (i32, i32) {
    %c0_i32 = arith.constant 0 : i32
    %c0_i32_0 = arith.constant 0 : i32
    %c0_i32_1 = arith.constant 0 : i32
    return %c0_i32, %c0_i32_0 : i32, i32
  }
  func.func @transform_5(%arg0: i32) -> (i32, i32) {
    %c0_i32 = arith.constant 0 : i32
    %c0_i32_0 = arith.constant 0 : i32
    return %arg0, %c0_i32 : i32, i32
  }
}

</mosaic_0001>

<llo_original>
// kernel: tpu_custom_call.1
$region0: #{tpu_custom_call.1}
  #allocation0 [shape = 'u32[]', space=smem, size = 0x4, offset = 0x4, fixed_abs, tag = 'smem constant byte address 0x4 - core index']
  #allocation1 [shape = 'u32[144,128]{1,0:T(1,128)}', space=vmem, size = 0x12000, scoped, tag = 'internal scratch']
  %s0 = inlined_call_operand.hbm [shape: f32[24,128], index: 0, kind: input, shape index: {}]
  %s1 = inlined_call_operand.hbm [shape: f32[128,512], index: 1, kind: input, shape index: {}]
  %s2 = inlined_call_operand.vmem [shape: f32[1,512], index: 2, kind: input, shape index: {}]
  %s3 = inlined_call_operand.hbm [shape: f32[512,128], index: 3, kind: input, shape index: {}]
  %s4 = inlined_call_operand.vmem [shape: f32[1,128], index: 4, kind: input, shape index: {}]
  %s5 = inlined_call_operand.hbm [shape: f32[24,128], index: 5, kind: output, shape index: {}]
  %s6 = sld [smem:[#allocation0]]
  $region42: #{tpu_custom_call.1} parent=0
    _
  %s8 = ssub.s32 1, %s6
  %s9 = scalar_select 0, %s8, %s6
  $region1: #{tpu_custom_call.1} parent=0
    #allocation2 [shape = 'u8[12288]{0}', space=vmem, size = 0x3000, scoped, tag = 'input window, operand 0, single buffered']
    #allocation3 [shape = 's32[1]{0}', space=sflag, size = 0x4, scoped, tag = 'scoped memory for tpu_custom_call.1']
    #allocation4 [shape = 's32[1]{0}', space=sflag, size = 0x4, scoped, tag = 'scoped memory for tpu_custom_call.1']
    #allocation5 [shape = 'u8[262144]{0}', space=vmem, size = 0x40000, scoped, tag = 'input window, operand 1, single buffered']
    #allocation6 [shape = 's32[1]{0}', space=sflag, size = 0x4, scoped, tag = 'scoped memory for tpu_custom_call.1']
    #allocation7 [shape = 'u8[262144]{0}', space=vmem, size = 0x40000, scoped, tag = 'input window, operand 3, single buffered']
    #allocation8 [shape = 'u8[12288]{0}', space=vmem, size = 0x3000, scoped, tag = 'output window, operand 0, single buffered']
    %10 = vsyncpa [#allocation3], 0
    %11 = vsyncpa [#allocation6], 0
    %12 = vsyncpa [#allocation4], 0
    // Predicated region
    $region2: #{tpu_custom_call.1} parent=1 // pred_check
      _
    $region3: #{tpu_custom_call.1} parent=1 // pred_check_branch
      %14 = sbr.rel (0) target = $region5
    $region4: #{tpu_custom_call.1} parent=1 // pred_region
      %s16 = ssub.s32 384, 384
      %17 = vsyncadd [#allocation3], %s16
      %s18 = sshll.u32 [#allocation2], 4
      %s19 = int_to_ptr.vmem [resolvable:$true] %s18
      %24 = dma.hbm_to_vmem [thread:$0]  %s0, 384, %s19, [#allocation3], 128, 128, 8
    $region5: #{tpu_custom_call.1} parent=1 // pred_fallthru
      _
    // Predicated region
    $region6: #{tpu_custom_call.1} parent=1 // pred_check
      _
    $region7: #{tpu_custom_call.1} parent=1 // pred_check_branch
      %26 = sbr.rel (0) target = $region9
    $region8: #{tpu_custom_call.1} parent=1 // pred_region
      %s28 = ssub.s32 8192, 8192
      %29 = vsyncadd [#allocation6], %s28
      %s30 = sshll.u32 [#allocation5], 4
      %s31 = int_to_ptr.vmem [resolvable:$true] %s30
      %36 = dma.hbm_to_vmem [thread:$0]  %s1, 8192, %s31, [#allocation6], 512, 512, 32
    $region9: #{tpu_custom_call.1} parent=1 // pred_fallthru
      _
    // Predicated region
    $region10: #{tpu_custom_call.1} parent=1 // pred_check
      _
    $region11: #{tpu_custom_call.1} parent=1 // pred_check_branch
      %38 = sbr.rel (0) target = $region13
    $region12: #{tpu_custom_call.1} parent=1 // pred_region
      _
    $region13: #{tpu_custom_call.1} parent=1 // pred_fallthru
      _
    // Predicated region
    $region14: #{tpu_custom_call.1} parent=1 // pred_check
      _
    $region15: #{tpu_custom_call.1} parent=1 // pred_check_branch
      %40 = sbr.rel (0) target = $region17
    $region16: #{tpu_custom_call.1} parent=1 // pred_region
      %s42 = ssub.s32 8192, 8192
      %43 = vsyncadd [#allocation6], %s42
      %s44 = sshll.u32 [#allocation7], 4
      %s45 = int_to_ptr.vmem [resolvable:$true] %s44
      %50 = dma.hbm_to_vmem [thread:$0]  %s3, 8192, %s45, [#allocation6], 128, 128, 8
    $region17: #{tpu_custom_call.1} parent=1 // pred_fallthru
      _
    // Predicated region
    $region18: #{tpu_custom_call.1} parent=1 // pred_check
      _
    $region19: #{tpu_custom_call.1} parent=1 // pred_check_branch
      %52 = sbr.rel (0) target = $region21
    $region20: #{tpu_custom_call.1} parent=1 // pred_region
      _
    $region21: #{tpu_custom_call.1} parent=1 // pred_fallthru
      _
    // Predicated region
    $region22: #{tpu_custom_call.1} parent=1 // pred_check
      _
    $region23: #{tpu_custom_call.1} parent=1 // pred_check_branch
      %54 = sbr.rel (0) target = $region25
    $region24: #{tpu_custom_call.1} parent=1 // pred_region
      %55 = dma.done [#allocation3], 384
    $region25: #{tpu_custom_call.1} parent=1 // pred_fallthru
      _
    // Predicated region
    $region26: #{tpu_custom_call.1} parent=1 // pred_check
      _
    $region27: #{tpu_custom_call.1} parent=1 // pred_check_branch
      %57 = sbr.rel (0) target = $region29
    $region28: #{tpu_custom_call.1} parent=1 // pred_region
      %58 = dma.done [#allocation6], 8192
    $region29: #{tpu_custom_call.1} parent=1 // pred_fallthru
      _
    // Predicated region
    $region30: #{tpu_custom_call.1} parent=1 // pred_check
      _
    $region31: #{tpu_custom_call.1} parent=1 // pred_check_branch
      %60 = sbr.rel (0) target = $region33
    $region32: #{tpu_custom_call.1} parent=1 // pred_region
      %61 = dma.done [#allocation6], 8192
    $region33: #{tpu_custom_call.1} parent=1 // pred_fallthru
      _
    %v62 = vld [vmem:[#allocation2] sm:$0xff]
    %v63 = vld [vmem:[#allocation2 + $0x8] sm:$0xff]
    %v64 = vld [vmem:[#allocation2 + $0x10] sm:$0xff]
    %v65 = vld [vmem:[#allocation5] sm:$0xff]
    %v66 = vld [vmem:[#allocation5 + $0x8] sm:$0xff]
    %v67 = vld [vmem:[#allocation5 + $0x10] sm:$0xff]
    %v68 = vld [vmem:[#allocation5 + $0x18] sm:$0xff]
    %v69 = vld [vmem:[#allocation5 + $0x20] sm:$0xff]
    %v70 = vld [vmem:[#allocation5 + $0x28] sm:$0xff]
    %v71 = vld [vmem:[#allocation5 + $0x30] sm:$0xff]
    %v72 = vld [vmem:[#allocation5 + $0x38] sm:$0xff]
    %v73 = vld [vmem:[#allocation5 + $0x40] sm:$0xff]
    %v74 = vld [vmem:[#allocation5 + $0x48] sm:$0xff]
    %v75 = vld [vmem:[#allocation5 + $0x50] sm:$0xff]
    %v76 = vld [vmem:[#allocation5 + $0x58] sm:$0xff]
    %v77 = vld [vmem:[#allocation5 + $0x60] sm:$0xff]
    %v78 = vld [vmem:[#allocation5 + $0x68] sm:$0xff]
    %v79 = vld [vmem:[#allocation5 + $0x70] sm:$0xff]
    %v80 = vld [vmem:[#allocation5 + $0x78] sm:$0xff]
    %v81 = vld [vmem:[#allocation5 + $0x80] sm:$0xff]
    %v82 = vld [vmem:[#allocation5 + $0x88] sm:$0xff]
    %v83 = vld [vmem:[#allocation5 + $0x90] sm:$0xff]
    %v84 = vld [vmem:[#allocation5 + $0x98] sm:$0xff]
    %v85 = vld [vmem:[#allocation5 + $0xa0] sm:$0xff]
    %v86 = vld [vmem:[#allocation5 + $0xa8] sm:$0xff]
    %v87 = vld [vmem:[#allocation5 + $0xb0] sm:$0xff]
    %v88 = vld [vmem:[#allocation5 + $0xb8] sm:$0xff]
    %v89 = vld [vmem:[#allocation5 + $0xc0] sm:$0xff]
    %v90 = vld [vmem:[#allocation5 + $0xc8] sm:$0xff]
    %v91 = vld [vmem:[#allocation5 + $0xd0] sm:$0xff]
    %v92 = vld [vmem:[#allocation5 + $0xd8] sm:$0xff]
    %v93 = vld [vmem:[#allocation5 + $0xe0] sm:$0xff]
    %v94 = vld [vmem:[#allocation5 + $0xe8] sm:$0xff]
    %v95 = vld [vmem:[#allocation5 + $0xf0] sm:$0xff]
    %v96 = vld [vmem:[#allocation5 + $0xf8] sm:$0xff]
    %v97 = vld [vmem:[#allocation5 + $0x100] sm:$0xff]
    %v98 = vld [vmem:[#allocation5 + $0x108] sm:$0xff]
    %v99 = vld [vmem:[#allocation5 + $0x110] sm:$0xff]
    %v100 = vld [vmem:[#allocation5 + $0x118] sm:$0xff]
    %v101 = vld [vmem:[#allocation5 + $0x120] sm:$0xff]
    %v102 = vld [vmem:[#allocation5 + $0x128] sm:$0xff]
    %v103 = vld [vmem:[#allocation5 + $0x130] sm:$0xff]
    %v104 = vld [vmem:[#allocation5 + $0x138] sm:$0xff]
    %v105 = vld [vmem:[#allocation5 + $0x140] sm:$0xff]
    %v106 = vld [vmem:[#allocation5 + $0x148] sm:$0xff]
    %v107 = vld [vmem:[#allocation5 + $0x150] sm:$0xff]
    %v108 = vld [vmem:[#allocation5 + $0x158] sm:$0xff]
    %v109 = vld [vmem:[#allocation5 + $0x160] sm:$0xff]
    %v110 = vld [vmem:[#allocation5 + $0x168] sm:$0xff]
    %v111 = vld [vmem:[#allocation5 + $0x170] sm:$0xff]
    %v112 = vld [vmem:[#allocation5 + $0x178] sm:$0xff]
    %v113 = vld [vmem:[#allocation5 + $0x180] sm:$0xff]
    %v114 = vld [vmem:[#allocation5 + $0x188] sm:$0xff]
    %v115 = vld [vmem:[#allocation5 + $0x190] sm:$0xff]
    %v116 = vld [vmem:[#allocation5 + $0x198] sm:$0xff]
    %v117 = vld [vmem:[#allocation5 + $0x1a0] sm:$0xff]
    %v118 = vld [vmem:[#allocation5 + $0x1a8] sm:$0xff]
    %v119 = vld [vmem:[#allocation5 + $0x1b0] sm:$0xff]
    %v120 = vld [vmem:[#allocation5 + $0x1b8] sm:$0xff]
    %v121 = vld [vmem:[#allocation5 + $0x1c0] sm:$0xff]
    %v122 = vld [vmem:[#allocation5 + $0x1c8] sm:$0xff]
    %v123 = vld [vmem:[#allocation5 + $0x1d0] sm:$0xff]
    %v124 = vld [vmem:[#allocation5 + $0x1d8] sm:$0xff]
    %v125 = vld [vmem:[#allocation5 + $0x1e0] sm:$0xff]
    %v126 = vld [vmem:[#allocation5 + $0x1e8] sm:$0xff]
    %v127 = vld [vmem:[#allocation5 + $0x1f0] sm:$0xff]
    %v128 = vld [vmem:[#allocation5 + $0x1f8] sm:$0xff]
    %v129 = vld [vmem:[%s2] sm:$0xf]
    %v131 = vlaneseq
    %v132 = vshrl.u32 %v131, 7
    %v133 = vsub.s32 0, %v132
    %v134 = vrot.slane %v129, %v133
    %v135 = vlaneseq
    %v136 = vshrl.u32 %v135, 7
    %v137 = vsub.s32 1, %v136
    %v138 = vrot.slane %v129, %v137
    %v139 = vlaneseq
    %v140 = vshrl.u32 %v139, 7
    %v141 = vsub.s32 2, %v140
    %v142 = vrot.slane %v129, %v141
    %v143 = vlaneseq
    %v144 = vshrl.u32 %v143, 7
    %v145 = vsub.s32 3, %v144
    %v146 = vrot.slane %v129, %v145
    %151 = vmatprep.subr.mxu0 %v66
    %152 = vmatpush1.msra.mxu0 %v65
    %153 = vmatprep.subr.mxu0 %v70
    %154 = vmatpush1.msra.mxu0 %v69
    %155 = vmatprep.subr.mxu0 %v74
    %156 = vmatpush1.msra.mxu0 %v73
    %157 = vmatprep.subr.mxu0 %v78
    %158 = vmatpush1.msra.mxu0 %v77
    %159 = vmatprep.subr.mxu0 %v82
    %160 = vmatpush1.msra.mxu0 %v81
    %161 = vmatprep.subr.mxu0 %v86
    %162 = vmatpush1.msra.mxu0 %v85
    %163 = vmatprep.subr.mxu0 %v90
    %164 = vmatpush1.msra.mxu0 %v89
    %165 = vmatprep.subr.mxu0 %v94
    %166 = vmatpush1.msra.mxu0 %v93
    %167 = vmatprep.subr.mxu0 %v98
    %168 = vmatpush1.msra.mxu0 %v97
    %169 = vmatprep.subr.mxu0 %v102
    %170 = vmatpush1.msra.mxu0 %v101
    %171 = vmatprep.subr.mxu0 %v106
    %172 = vmatpush1.msra.mxu0 %v105
    %173 = vmatprep.subr.mxu0 %v110
    %174 = vmatpush1.msra.mxu0 %v109
    %175 = vmatprep.subr.mxu0 %v114
    %176 = vmatpush1.msra.mxu0 %v113
    %177 = vmatprep.subr.mxu0 %v118
    %178 = vmatpush1.msra.mxu0 %v117
    %179 = vmatprep.subr.mxu0 %v122
    %180 = vmatpush1.msra.mxu0 %v121
    %181 = vmatprep.subr.mxu0 %v126
    %182 = vmatpush1.msra.mxu0 %v125
    %183 = vmatprep.subr.mxu0 0.0
    %184 = vmatpush1.msra.mxu0 0.0
    %185 = vmatprep.subr.mxu0 0.0
    %186 = vmatpush1.msra.mxu0 0.0
    %187 = vmatprep.subr.mxu0 0.0
    %188 = vmatpush1.msra.mxu0 0.0
    %189 = vmatprep.subr.mxu0 0.0
    %190 = vmatpush1.msra.mxu0 0.0
    %191 = vmatprep.subr.mxu0 0.0
    %192 = vmatpush1.msra.mxu0 0.0
    %193 = vmatprep.subr.mxu0 0.0
    %194 = vmatpush1.msra.mxu0 0.0
    %195 = vmatprep.subr.mxu0 0.0
    %196 = vmatpush1.msra.mxu0 0.0
    %197 = vmatprep.subr.mxu0 0.0
    %198 = vmatpush1.msra.mxu0 0.0
    %199 = vmatprep.subr.mxu0 0.0
    %200 = vmatpush1.msra.mxu0 0.0
    %201 = vmatprep.subr.mxu0 0.0
    %202 = vmatpush1.msra.mxu0 0.0
    %203 = vmatprep.subr.mxu0 0.0
    %204 = vmatpush1.msra.mxu0 0.0
    %205 = vmatprep.subr.mxu0 0.0
    %206 = vmatpush1.msra.mxu0 0.0
    %207 = vmatprep.subr.mxu0 0.0
    %208 = vmatpush1.msra.mxu0 0.0
    %209 = vmatprep.subr.mxu0 0.0
    %210 = vmatpush1.msra.mxu0 0.0
    %211 = vmatprep.subr.mxu0 0.0
    %212 = vmatpush1.msra.mxu0 0.0
    %213 = vmatprep.subr.mxu0 0.0
    %214 = vmatpush1.msra.mxu0 0.0
    %215 = vmatprep.mubr.f32.mxu0 0.0
    %216 = vmatmul.mubr.f32.gmra.mrb[0].mxu0 %v62
    %v217 = vpop.f32.mrb[0].mxu0
    %v218 = vadd.f32 %v134, %v217
    %v219 = vpop.f32.mrb[0].mxu0
    %v220 = vadd.f32 %v138, %v219
    %221 = vmatprep.mubr.f32.mxu0 0.0
    %222 = vmatmul.mubr.f32.gmra.mrb[0].mxu0 %v63
    %v223 = vpop.f32.mrb[0].mxu0
    %v224 = vadd.f32 %v134, %v223
    %v225 = vpop.f32.mrb[0].mxu0
    %v226 = vadd.f32 %v138, %v225
    %227 = vmatprep.mubr.f32.mxu0 0.0
    %228 = vmatmul.mubr.f32.gmra.mrb[0].mxu0 %v64
    %v229 = vpop.f32.mrb[0].mxu0
    %v230 = vadd.f32 %v134, %v229
    %v231 = vpop.f32.mrb[0].mxu0
    %v232 = vadd.f32 %v138, %v231
    %233 = vdwg.mxu0
    %234 = vmatprep.subr.mxu0 %v68
    %235 = vmatpush1.msra.mxu0 %v67
    %236 = vmatprep.subr.mxu0 %v72
    %237 = vmatpush1.msra.mxu0 %v71
    %238 = vmatprep.subr.mxu0 %v76
    %239 = vmatpush1.msra.mxu0 %v75
    %240 = vmatprep.subr.mxu0 %v80
    %241 = vmatpush1.msra.mxu0 %v79
    %242 = vmatprep.subr.mxu0 %v84
    %243 = vmatpush1.msra.mxu0 %v83
    %244 = vmatprep.subr.mxu0 %v88
    %245 = vmatpush1.msra.mxu0 %v87
    %246 = vmatprep.subr.mxu0 %v92
    %247 = vmatpush1.msra.mxu0 %v91
    %248 = vmatprep.subr.mxu0 %v96
    %249 = vmatpush1.msra.mxu0 %v95
    %250 = vmatprep.subr.mxu0 %v100
    %251 = vmatpush1.msra.mxu0 %v99
    %252 = vmatprep.subr.mxu0 %v104
    %253 = vmatpush1.msra.mxu0 %v103
    %254 = vmatprep.subr.mxu0 %v108
    %255 = vmatpush1.msra.mxu0 %v107
    %256 = vmatprep.subr.mxu0 %v112
    %257 = vmatpush1.msra.mxu0 %v111
    %258 = vmatprep.subr.mxu0 %v116
    %259 = vmatpush1.msra.mxu0 %v115
    %260 = vmatprep.subr.mxu0 %v120
    %261 = vmatpush1.msra.mxu0 %v119
    %262 = vmatprep.subr.mxu0 %v124
    %263 = vmatpush1.msra.mxu0 %v123
    %264 = vmatprep.subr.mxu0 %v128
    %265 = vmatpush1.msra.mxu0 %v127
    %266 = vmatprep.subr.mxu0 0.0
    %267 = vmatpush1.msra.mxu0 0.0
    %268 = vmatprep.subr.mxu0 0.0
    %269 = vmatpush1.msra.mxu0 0.0
    %270 = vmatprep.subr.mxu0 0.0
    %271 = vmatpush1.msra.mxu0 0.0
    %272 = vmatprep.subr.mxu0 0.0
    %273 = vmatpush1.msra.mxu0 0.0
    %274 = vmatprep.subr.mxu0 0.0
    %275 = vmatpush1.msra.mxu0 0.0
    %276 = vmatprep.subr.mxu0 0.0
    %277 = vmatpush1.msra.mxu0 0.0
    %278 = vmatprep.subr.mxu0 0.0
    %279 = vmatpush1.msra.mxu0 0.0
    %280 = vmatprep.subr.mxu0 0.0
    %281 = vmatpush1.msra.mxu0 0.0
    %282 = vmatprep.subr.mxu0 0.0
    %283 = vmatpush1.msra.mxu0 0.0
    %284 = vmatprep.subr.mxu0 0.0
    %285 = vmatpush1.msra.mxu0 0.0
    %286 = vmatprep.subr.mxu0 0.0
    %287 = vmatpush1.msra.mxu0 0.0
    %288 = vmatprep.subr.mxu0 0.0
    %289 = vmatpush1.msra.mxu0 0.0
    %290 = vmatprep.subr.mxu0 0.0
    %291 = vmatpush1.msra.mxu0 0.0
    %292 = vmatprep.subr.mxu0 0.0
    %293 = vmatpush1.msra.mxu0 0.0
    %294 = vmatprep.subr.mxu0 0.0
    %295 = vmatpush1.msra.mxu0 0.0
    %296 = vmatprep.subr.mxu0 0.0
    %297 = vmatpush1.msra.mxu0 0.0
    %298 = vmatprep.mubr.f32.mxu0 0.0
    %299 = vmatmul.mubr.f32.gmra.mrb[0].mxu0 %v62
    %v300 = vpop.f32.mrb[0].mxu0
    %v301 = vadd.f32 %v142, %v300
    %v302 = vpop.f32.mrb[0].mxu0
    %v303 = vadd.f32 %v146, %v302
    %304 = vmatprep.mubr.f32.mxu0 0.0
    %305 = vmatmul.mubr.f32.gmra.mrb[0].mxu0 %v63
    %v306 = vpop.f32.mrb[0].mxu0
    %v307 = vadd.f32 %v142, %v306
    %v308 = vpop.f32.mrb[0].mxu0
    %v309 = vadd.f32 %v146, %v308
    %310 = vmatprep.mubr.f32.mxu0 0.0
    %311 = vmatmul.mubr.f32.gmra.mrb[0].mxu0 %v64
    %v312 = vpop.f32.mrb[0].mxu0
    %v313 = vadd.f32 %v142, %v312
    %v314 = vpop.f32.mrb[0].mxu0
    %v315 = vadd.f32 %v146, %v314
    %316 = vdwg.mxu0
    %v317 = vmul.f32 %v218, 0.5
    %v318 = vmul.f32 %v220, 0.5
    %v319 = vmul.f32 %v301, 0.5
    %v320 = vmul.f32 %v303, 0.5
    %v321 = vmul.f32 %v224, 0.5
    %v322 = vmul.f32 %v226, 0.5
    %v323 = vmul.f32 %v307, 0.5
    %v324 = vmul.f32 %v309, 0.5
    %v325 = vmul.f32 %v230, 0.5
    %v326 = vmul.f32 %v232, 0.5
    %v327 = vmul.f32 %v313, 0.5
    %v328 = vmul.f32 %v315, 0.5
    %v329 = vmul.f32 %v218, 0.70710677
    %v330 = vmul.f32 %v220, 0.70710677
    %v331 = vmul.f32 %v301, 0.70710677
    %v332 = vmul.f32 %v303, 0.70710677
    %v333 = vmul.f32 %v224, 0.70710677
    %v334 = vmul.f32 %v226, 0.70710677
    %v335 = vmul.f32 %v307, 0.70710677
    %v336 = vmul.f32 %v309, 0.70710677
    %v337 = vmul.f32 %v230, 0.70710677
    %v338 = vmul.f32 %v232, 0.70710677
    %v339 = vmul.f32 %v313, 0.70710677
    %v340 = vmul.f32 %v315, 0.70710677
    %v341 = vand.u32 2147483647, %v329
    %v342 = vand.u32 2147483647, %v330
    %v343 = vand.u32 2147483647, %v331
    %v344 = vand.u32 2147483647, %v332
    %v345 = vand.u32 2147483647, %v333
    %v346 = vand.u32 2147483647, %v334
    %v347 = vand.u32 2147483647, %v335
    %v348 = vand.u32 2147483647, %v336
    %v349 = vand.u32 2147483647, %v337
    %v350 = vand.u32 2147483647, %v338
    %v351 = vand.u32 2147483647, %v339
    %v352 = vand.u32 2147483647, %v340
    %v353 = vmul.f32 %v341, 0.3275911
    %v354 = vmul.f32 %v342, 0.3275911
    %v355 = vmul.f32 %v343, 0.3275911
    %v356 = vmul.f32 %v344, 0.3275911
    %v357 = vmul.f32 %v345, 0.3275911
    %v358 = vmul.f32 %v346, 0.3275911
    %v359 = vmul.f32 %v347, 0.3275911
    %v360 = vmul.f32 %v348, 0.3275911
    %v361 = vmul.f32 %v349, 0.3275911
    %v362 = vmul.f32 %v350, 0.3275911
    %v363 = vmul.f32 %v351, 0.3275911
    %v364 = vmul.f32 %v352, 0.3275911
    %v365 = vadd.f32 %v353, 1.0
    %v366 = vadd.f32 %v354, 1.0
    %v367 = vadd.f32 %v355, 1.0
    %v368 = vadd.f32 %v356, 1.0
    %v369 = vadd.f32 %v357, 1.0
    %v370 = vadd.f32 %v358, 1.0
    %v371 = vadd.f32 %v359, 1.0
    %v372 = vadd.f32 %v360, 1.0
    %v373 = vadd.f32 %v361, 1.0
    %v374 = vadd.f32 %v362, 1.0
    %v375 = vadd.f32 %v363, 1.0
    %v376 = vadd.f32 %v364, 1.0
    %v377 = vrcp.pop %v365
    %v378 = vmul.f32 1.0, %v377
    %v379 = vrcp.pop %v366
    %v380 = vmul.f32 1.0, %v379
    %v381 = vrcp.pop %v367
    %v382 = vmul.f32 1.0, %v381
    %v383 = vrcp.pop %v368
    %v384 = vmul.f32 1.0, %v383
    %v385 = vrcp.pop %v369
    %v386 = vmul.f32 1.0, %v385
    %v387 = vrcp.pop %v370
    %v388 = vmul.f32 1.0, %v387
    %v389 = vrcp.pop %v371
    %v390 = vmul.f32 1.0, %v389
    %v391 = vrcp.pop %v372
    %v392 = vmul.f32 1.0, %v391
    %v393 = vrcp.pop %v373
    %v394 = vmul.f32 1.0, %v393
    %v395 = vrcp.pop %v374
    %v396 = vmul.f32 1.0, %v395
    %v397 = vrcp.pop %v375
    %v398 = vmul.f32 1.0, %v397
    %v399 = vrcp.pop %v376
    %v400 = vmul.f32 1.0, %v399
    %v401 = vmul.f32 %v378, 1.0614054
    %v402 = vmul.f32 %v380, 1.0614054
    %v403 = vmul.f32 %v382, 1.0614054
    %v404 = vmul.f32 %v384, 1.0614054
    %v405 = vmul.f32 %v386, 1.0614054
    %v406 = vmul.f32 %v388, 1.0614054
    %v407 = vmul.f32 %v390, 1.0614054
    %v408 = vmul.f32 %v392, 1.0614054
    %v409 = vmul.f32 %v394, 1.0614054
    %v410 = vmul.f32 %v396, 1.0614054
    %v411 = vmul.f32 %v398, 1.0614054
    %v412 = vmul.f32 %v400, 1.0614054
    %v413 = vadd.f32 %v401, -1.4531521
    %v414 = vadd.f32 %v402, -1.4531521
    %v415 = vadd.f32 %v403, -1.4531521
    %v416 = vadd.f32 %v404, -1.4531521
    %v417 = vadd.f32 %v405, -1.4531521
    %v418 = vadd.f32 %v406, -1.4531521
    %v419 = vadd.f32 %v407, -1.4531521
    %v420 = vadd.f32 %v408, -1.4531521
    %v421 = vadd.f32 %v409, -1.4531521
    %v422 = vadd.f32 %v410, -1.4531521
    %v423 = vadd.f32 %v411, -1.4531521
    %v424 = vadd.f32 %v412, -1.4531521
    %v425 = vmul.f32 %v413, %v378
    %v426 = vmul.f32 %v414, %v380
    %v427 = vmul.f32 %v415, %v382
    %v428 = vmul.f32 %v416, %v384
    %v429 = vmul.f32 %v417, %v386
    %v430 = vmul.f32 %v418, %v388
    %v431 = vmul.f32 %v419, %v390
    %v432 = vmul.f32 %v420, %v392
    %v433 = vmul.f32 %v421, %v394
    %v434 = vmul.f32 %v422, %v396
    %v435 = vmul.f32 %v423, %v398
    %v436 = vmul.f32 %v424, %v400
    %v437 = vadd.f32 %v425, 1.4214138
    %v438 = vadd.f32 %v426, 1.4214138
    %v439 = vadd.f32 %v427, 1.4214138
    %v440 = vadd.f32 %v428, 1.4214138
    %v441 = vadd.f32 %v429, 1.4214138
    %v442 = vadd.f32 %v430, 1.4214138
    %v443 = vadd.f32 %v431, 1.4214138
    %v444 = vadd.f32 %v432, 1.4214138
    %v445 = vadd.f32 %v433, 1.4214138
    %v446 = vadd.f32 %v434, 1.4214138
    %v447 = vadd.f32 %v435, 1.4214138
    %v448 = vadd.f32 %v436, 1.4214138
    %v449 = vmul.f32 %v437, %v378
    %v450 = vmul.f32 %v438, %v380
    %v451 = vmul.f32 %v439, %v382
    %v452 = vmul.f32 %v440, %v384
    %v453 = vmul.f32 %v441, %v386
    %v454 = vmul.f32 %v442, %v388
    %v455 = vmul.f32 %v443, %v390
    %v456 = vmul.f32 %v444, %v392
    %v457 = vmul.f32 %v445, %v394
    %v458 = vmul.f32 %v446, %v396
    %v459 = vmul.f32 %v447, %v398
    %v460 = vmul.f32 %v448, %v400
    %v461 = vadd.f32 %v449, -0.28449672
    %v462 = vadd.f32 %v450, -0.28449672
    %v463 = vadd.f32 %v451, -0.28449672
    %v464 = vadd.f32 %v452, -0.28449672
    %v465 = vadd.f32 %v453, -0.28449672
    %v466 = vadd.f32 %v454, -0.28449672
    %v467 = vadd.f32 %v455, -0.28449672
    %v468 = vadd.f32 %v456, -0.28449672
    %v469 = vadd.f32 %v457, -0.28449672
    %v470 = vadd.f32 %v458, -0.28449672
    %v471 = vadd.f32 %v459, -0.28449672
    %v472 = vadd.f32 %v460, -0.28449672
    %v473 = vmul.f32 %v461, %v378
    %v474 = vmul.f32 %v462, %v380
    %v475 = vmul.f32 %v463, %v382
    %v476 = vmul.f32 %v464, %v384
    %v477 = vmul.f32 %v465, %v386
    %v478 = vmul.f32 %v466, %v388
    %v479 = vmul.f32 %v467, %v390
    %v480 = vmul.f32 %v468, %v392
    %v481 = vmul.f32 %v469, %v394
    %v482 = vmul.f32 %v470, %v396
    %v483 = vmul.f32 %v471, %v398
    %v484 = vmul.f32 %v472, %v400
    %v485 = vadd.f32 %v473, 0.2548296
    %v486 = vadd.f32 %v474, 0.2548296
    %v487 = vadd.f32 %v475, 0.2548296
    %v488 = vadd.f32 %v476, 0.2548296
    %v489 = vadd.f32 %v477, 0.2548296
    %v490 = vadd.f32 %v478, 0.2548296
    %v491 = vadd.f32 %v479, 0.2548296
    %v492 = vadd.f32 %v480, 0.2548296
    %v493 = vadd.f32 %v481, 0.2548296
    %v494 = vadd.f32 %v482, 0.2548296
    %v495 = vadd.f32 %v483, 0.2548296
    %v496 = vadd.f32 %v484, 0.2548296
    %v497 = vmul.f32 %v485, %v378
    %v498 = vmul.f32 %v486, %v380
    %v499 = vmul.f32 %v487, %v382
    %v500 = vmul.f32 %v488, %v384
    %v501 = vmul.f32 %v489, %v386
    %v502 = vmul.f32 %v490, %v388
    %v503 = vmul.f32 %v491, %v390
    %v504 = vmul.f32 %v492, %v392
    %v505 = vmul.f32 %v493, %v394
    %v506 = vmul.f32 %v494, %v396
    %v507 = vmul.f32 %v495, %v398
    %v508 = vmul.f32 %v496, %v400
    %v509 = vsub.f32 0.0, %v341
    %v510 = vsub.f32 0.0, %v342
    %v511 = vsub.f32 0.0, %v343
    %v512 = vsub.f32 0.0, %v344
    %v513 = vsub.f32 0.0, %v345
    %v514 = vsub.f32 0.0, %v346
    %v515 = vsub.f32 0.0, %v347
    %v516 = vsub.f32 0.0, %v348
    %v517 = vsub.f32 0.0, %v349
    %v518 = vsub.f32 0.0, %v350
    %v519 = vsub.f32 0.0, %v351
    %v520 = vsub.f32 0.0, %v352
    %v521 = vmul.f32 %v509, %v341
    %v522 = vmul.f32 %v510, %v342
    %v523 = vmul.f32 %v511, %v343
    %v524 = vmul.f32 %v512, %v344
    %v525 = vmul.f32 %v513, %v345
    %v526 = vmul.f32 %v514, %v346
    %v527 = vmul.f32 %v515, %v347
    %v528 = vmul.f32 %v516, %v348
    %v529 = vmul.f32 %v517, %v349
    %v530 = vmul.f32 %v518, %v350
    %v531 = vmul.f32 %v519, %v351
    %v532 = vmul.f32 %v520, %v352
    %v533 = vmul.f32 %v521, 1.442695
    %v534 = vpow.pop %v533
    %v535 = vmul.f32 %v522, 1.442695
    %v536 = vpow.pop %v535
    %v537 = vmul.f32 %v523, 1.442695
    %v538 = vpow.pop %v537
    %v539 = vmul.f32 %v524, 1.442695
    %v540 = vpow.pop %v539
    %v541 = vmul.f32 %v525, 1.442695
    %v542 = vpow.pop %v541
    %v543 = vmul.f32 %v526, 1.442695
    %v544 = vpow.pop %v543
    %v545 = vmul.f32 %v527, 1.442695
    %v546 = vpow.pop %v545
    %v547 = vmul.f32 %v528, 1.442695
    %v548 = vpow.pop %v547
    %v549 = vmul.f32 %v529, 1.442695
    %v550 = vpow.pop %v549
    %v551 = vmul.f32 %v530, 1.442695
    %v552 = vpow.pop %v551
    %v553 = vmul.f32 %v531, 1.442695
    %v554 = vpow.pop %v553
    %v555 = vmul.f32 %v532, 1.442695
    %v556 = vpow.pop %v555
    %v557 = vmul.f32 %v497, %v534
    %v558 = vmul.f32 %v498, %v536
    %v559 = vmul.f32 %v499, %v538
    %v560 = vmul.f32 %v500, %v540
    %v561 = vmul.f32 %v501, %v542
    %v562 = vmul.f32 %v502, %v544
    %v563 = vmul.f32 %v503, %v546
    %v564 = vmul.f32 %v504, %v548
    %v565 = vmul.f32 %v505, %v550
    %v566 = vmul.f32 %v506, %v552
    %v567 = vmul.f32 %v507, %v554
    %v568 = vmul.f32 %v508, %v556
    %v569 = vsub.f32 1.0, %v557
    %v570 = vsub.f32 1.0, %v558
    %v571 = vsub.f32 1.0, %v559
    %v572 = vsub.f32 1.0, %v560
    %v573 = vsub.f32 1.0, %v561
    %v574 = vsub.f32 1.0, %v562
    %v575 = vsub.f32 1.0, %v563
    %v576 = vsub.f32 1.0, %v564
    %v577 = vsub.f32 1.0, %v565
    %v578 = vsub.f32 1.0, %v566
    %v579 = vsub.f32 1.0, %v567
    %v580 = vsub.f32 1.0, %v568
    %vm581 = vcmp.ge.f32.partialorder %v329, 0.0
    %vm582 = vcmp.ge.f32.partialorder %v330, 0.0
    %vm583 = vcmp.ge.f32.partialorder %v331, 0.0
    %vm584 = vcmp.ge.f32.partialorder %v332, 0.0
    %vm585 = vcmp.ge.f32.partialorder %v333, 0.0
    %vm586 = vcmp.ge.f32.partialorder %v334, 0.0
    %vm587 = vcmp.ge.f32.partialorder %v335, 0.0
    %vm588 = vcmp.ge.f32.partialorder %v336, 0.0
    %vm589 = vcmp.ge.f32.partialorder %v337, 0.0
    %vm590 = vcmp.ge.f32.partialorder %v338, 0.0
    %vm591 = vcmp.ge.f32.partialorder %v339, 0.0
    %vm592 = vcmp.ge.f32.partialorder %v340, 0.0
    %v593 = vsub.f32 0.0, %v569
    %v594 = vsub.f32 0.0, %v570
    %v595 = vsub.f32 0.0, %v571
    %v596 = vsub.f32 0.0, %v572
    %v597 = vsub.f32 0.0, %v573
    %v598 = vsub.f32 0.0, %v574
    %v599 = vsub.f32 0.0, %v575
    %v600 = vsub.f32 0.0, %v576
    %v601 = vsub.f32 0.0, %v577
    %v602 = vsub.f32 0.0, %v578
    %v603 = vsub.f32 0.0, %v579
    %v604 = vsub.f32 0.0, %v580
    %v605 = vsel %vm581, %v569, %v593
    %v606 = vsel %vm582, %v570, %v594
    %v607 = vsel %vm583, %v571, %v595
    %v608 = vsel %vm584, %v572, %v596
    %v609 = vsel %vm585, %v573, %v597
    %v610 = vsel %vm586, %v574, %v598
    %v611 = vsel %vm587, %v575, %v599
    %v612 = vsel %vm588, %v576, %v600
    %v613 = vsel %vm589, %v577, %v601
    %v614 = vsel %vm590, %v578, %v602
    %v615 = vsel %vm591, %v579, %v603
    %v616 = vsel %vm592, %v580, %v604
    %v617 = vadd.f32 %v605, 1.0
    %v618 = vadd.f32 %v606, 1.0
    %v619 = vadd.f32 %v607, 1.0
    %v620 = vadd.f32 %v608, 1.0
    %v621 = vadd.f32 %v609, 1.0
    %v622 = vadd.f32 %v610, 1.0
    %v623 = vadd.f32 %v611, 1.0
    %v624 = vadd.f32 %v612, 1.0
    %v625 = vadd.f32 %v613, 1.0
    %v626 = vadd.f32 %v614, 1.0
    %v627 = vadd.f32 %v615, 1.0
    %v628 = vadd.f32 %v616, 1.0
    %v629 = vmul.f32 %v317, %v617
    %v630 = vmul.f32 %v318, %v618
    %v631 = vmul.f32 %v319, %v619
    %v632 = vmul.f32 %v320, %v620
    %v633 = vmul.f32 %v321, %v621
    %v634 = vmul.f32 %v322, %v622
    %v635 = vmul.f32 %v323, %v623
    %v636 = vmul.f32 %v324, %v624
    %v637 = vmul.f32 %v325, %v625
    %v638 = vmul.f32 %v326, %v626
    %v639 = vmul.f32 %v327, %v627
    %v640 = vmul.f32 %v328, %v628
    %v641 = vld [vmem:[#allocation7] sm:$0xff]
    %v642 = vld [vmem:[#allocation7 + $0x8] sm:$0xff]
    %v643 = vld [vmem:[#allocation7 + $0x10] sm:$0xff]
    %v644 = vld [vmem:[#allocation7 + $0x18] sm:$0xff]
    %v645 = vld [vmem:[#allocation7 + $0x20] sm:$0xff]
    %v646 = vld [vmem:[#allocation7 + $0x28] sm:$0xff]
    %v647 = vld [vmem:[#allocation7 + $0x30] sm:$0xff]
    %v648 = vld [vmem:[#allocation7 + $0x38] sm:$0xff]
    %v649 = vld [vmem:[#allocation7 + $0x40] sm:$0xff]
    %v650 = vld [vmem:[#allocation7 + $0x48] sm:$0xff]
    %v651 = vld [vmem:[#allocation7 + $0x50] sm:$0xff]
    %v652 = vld [vmem:[#allocation7 + $0x58] sm:$0xff]
    %v653 = vld [vmem:[#allocation7 + $0x60] sm:$0xff]
    %v654 = vld [vmem:[#allocation7 + $0x68] sm:$0xff]
    %v655 = vld [vmem:[#allocation7 + $0x70] sm:$0xff]
    %v656 = vld [vmem:[#allocation7 + $0x78] sm:$0xff]
    %v657 = vld [vmem:[#allocation7 + $0x80] sm:$0xff]
    %v658 = vld [vmem:[#allocation7 + $0x88] sm:$0xff]
    %v659 = vld [vmem:[#allocation7 + $0x90] sm:$0xff]
    %v660 = vld [vmem:[#allocation7 + $0x98] sm:$0xff]
    %v661 = vld [vmem:[#allocation7 + $0xa0] sm:$0xff]
    %v662 = vld [vmem:[#allocation7 + $0xa8] sm:$0xff]
    %v663 = vld [vmem:[#allocation7 + $0xb0] sm:$0xff]
    %v664 = vld [vmem:[#allocation7 + $0xb8] sm:$0xff]
    %v665 = vld [vmem:[#allocation7 + $0xc0] sm:$0xff]
    %v666 = vld [vmem:[#allocation7 + $0xc8] sm:$0xff]
    %v667 = vld [vmem:[#allocation7 + $0xd0] sm:$0xff]
    %v668 = vld [vmem:[#allocation7 + $0xd8] sm:$0xff]
    %v669 = vld [vmem:[#allocation7 + $0xe0] sm:$0xff]
    %v670 = vld [vmem:[#allocation7 + $0xe8] sm:$0xff]
    %v671 = vld [vmem:[#allocation7 + $0xf0] sm:$0xff]
    %v672 = vld [vmem:[#allocation7 + $0xf8] sm:$0xff]
    %v673 = vld [vmem:[#allocation7 + $0x100] sm:$0xff]
    %v674 = vld [vmem:[#allocation7 + $0x108] sm:$0xff]
    %v675 = vld [vmem:[#allocation7 + $0x110] sm:$0xff]
    %v676 = vld [vmem:[#allocation7 + $0x118] sm:$0xff]
    %v677 = vld [vmem:[#allocation7 + $0x120] sm:$0xff]
    %v678 = vld [vmem:[#allocation7 + $0x128] sm:$0xff]
    %v679 = vld [vmem:[#allocation7 + $0x130] sm:$0xff]
    %v680 = vld [vmem:[#allocation7 + $0x138] sm:$0xff]
    %v681 = vld [vmem:[#allocation7 + $0x140] sm:$0xff]
    %v682 = vld [vmem:[#allocation7 + $0x148] sm:$0xff]
    %v683 = vld [vmem:[#allocation7 + $0x150] sm:$0xff]
    %v684 = vld [vmem:[#allocation7 + $0x158] sm:$0xff]
    %v685 = vld [vmem:[#allocation7 + $0x160] sm:$0xff]
    %v686 = vld [vmem:[#allocation7 + $0x168] sm:$0xff]
    %v687 = vld [vmem:[#allocation7 + $0x170] sm:$0xff]
    %v688 = vld [vmem:[#allocation7 + $0x178] sm:$0xff]
    %v689 = vld [vmem:[#allocation7 + $0x180] sm:$0xff]
    %v690 = vld [vmem:[#allocation7 + $0x188] sm:$0xff]
    %v691 = vld [vmem:[#allocation7 + $0x190] sm:$0xff]
    %v692 = vld [vmem:[#allocation7 + $0x198] sm:$0xff]
    %v693 = vld [vmem:[#allocation7 + $0x1a0] sm:$0xff]
    %v694 = vld [vmem:[#allocation7 + $0x1a8] sm:$0xff]
    %v695 = vld [vmem:[#allocation7 + $0x1b0] sm:$0xff]
    %v696 = vld [vmem:[#allocation7 + $0x1b8] sm:$0xff]
    %v697 = vld [vmem:[#allocation7 + $0x1c0] sm:$0xff]
    %v698 = vld [vmem:[#allocation7 + $0x1c8] sm:$0xff]
    %v699 = vld [vmem:[#allocation7 + $0x1d0] sm:$0xff]
    %v700 = vld [vmem:[#allocation7 + $0x1d8] sm:$0xff]
    %v701 = vld [vmem:[#allocation7 + $0x1e0] sm:$0xff]
    %v702 = vld [vmem:[#allocation7 + $0x1e8] sm:$0xff]
    %v703 = vld [vmem:[#allocation7 + $0x1f0] sm:$0xff]
    %v704 = vld [vmem:[#allocation7 + $0x1f8] sm:$0xff]
    %v705 = vld [vmem:[%s4] sm:$0x1]
    %v707 = vlaneseq
    %v708 = vshrl.u32 %v707, 7
    %v709 = vsub.s32 0, %v708
    %v710 = vrot.slane %v705, %v709
    %712 = vmatprep.subr.mxu0 0.0
    %713 = vmatpush1.msra.mxu0 %v641
    %714 = vmatprep.subr.mxu0 0.0
    %715 = vmatpush1.msra.mxu0 %v642
    %716 = vmatprep.subr.mxu0 0.0
    %717 = vmatpush1.msra.mxu0 %v643
    %718 = vmatprep.subr.mxu0 0.0
    %719 = vmatpush1.msra.mxu0 %v644
    %720 = vmatprep.subr.mxu0 0.0
    %721 = vmatpush1.msra.mxu0 %v645
    %722 = vmatprep.subr.mxu0 0.0
    %723 = vmatpush1.msra.mxu0 %v646
    %724 = vmatprep.subr.mxu0 0.0
    %725 = vmatpush1.msra.mxu0 %v647
    %726 = vmatprep.subr.mxu0 0.0
    %727 = vmatpush1.msra.mxu0 %v648
    %728 = vmatprep.subr.mxu0 0.0
    %729 = vmatpush1.msra.mxu0 %v649
    %730 = vmatprep.subr.mxu0 0.0
    %731 = vmatpush1.msra.mxu0 %v650
    %732 = vmatprep.subr.mxu0 0.0
    %733 = vmatpush1.msra.mxu0 %v651
    %734 = vmatprep.subr.mxu0 0.0
    %735 = vmatpush1.msra.mxu0 %v652
    %736 = vmatprep.subr.mxu0 0.0
    %737 = vmatpush1.msra.mxu0 %v653
    %738 = vmatprep.subr.mxu0 0.0
    %739 = vmatpush1.msra.mxu0 %v654
    %740 = vmatprep.subr.mxu0 0.0
    %741 = vmatpush1.msra.mxu0 %v655
    %742 = vmatprep.subr.mxu0 0.0
    %743 = vmatpush1.msra.mxu0 %v656
    %744 = vmatprep.subr.mxu0 0.0
    %745 = vmatpush1.msra.mxu0 %v657
    %746 = vmatprep.subr.mxu0 0.0
    %747 = vmatpush1.msra.mxu0 %v658
    %748 = vmatprep.subr.mxu0 0.0
    %749 = vmatpush1.msra.mxu0 %v659
    %750 = vmatprep.subr.mxu0 0.0
    %751 = vmatpush1.msra.mxu0 %v660
    %752 = vmatprep.subr.mxu0 0.0
    %753 = vmatpush1.msra.mxu0 %v661
    %754 = vmatprep.subr.mxu0 0.0
    %755 = vmatpush1.msra.mxu0 %v662
    %756 = vmatprep.subr.mxu0 0.0
    %757 = vmatpush1.msra.mxu0 %v663
    %758 = vmatprep.subr.mxu0 0.0
    %759 = vmatpush1.msra.mxu0 %v664
    %760 = vmatprep.subr.mxu0 0.0
    %761 = vmatpush1.msra.mxu0 %v665
    %762 = vmatprep.subr.mxu0 0.0
    %763 = vmatpush1.msra.mxu0 %v666
    %764 = vmatprep.subr.mxu0 0.0
    %765 = vmatpush1.msra.mxu0 %v667
    %766 = vmatprep.subr.mxu0 0.0
    %767 = vmatpush1.msra.mxu0 %v668
    %768 = vmatprep.subr.mxu0 0.0
    %769 = vmatpush1.msra.mxu0 %v669
    %770 = vmatprep.subr.mxu0 0.0
    %771 = vmatpush1.msra.mxu0 %v670
    %772 = vmatprep.subr.mxu0 0.0
    %773 = vmatpush1.msra.mxu0 %v671
    %774 = vmatprep.subr.mxu0 0.0
    %775 = vmatpush1.msra.mxu0 %v672
    %776 = vmatprep.mubr.f32.mxu0 %v630
    %777 = vmatmul.mubr.f32.gmra.mrb[0].mxu0 %v629
    %v778 = vpop.f32.mrb[0].mxu0
    %v779 = vadd.f32 %v710, %v778
    %v780 = vpop.f32.mrb[0].mxu0
    %781 = vmatprep.mubr.f32.mxu0 %v634
    %782 = vmatmul.mubr.f32.gmra.mrb[0].mxu0 %v633
    %v783 = vpop.f32.mrb[0].mxu0
    %v784 = vadd.f32 %v710, %v783
    %v785 = vpop.f32.mrb[0].mxu0
    %786 = vmatprep.mubr.f32.mxu0 %v638
    %787 = vmatmul.mubr.f32.gmra.mrb[0].mxu0 %v637
    %v788 = vpop.f32.mrb[0].mxu0
    %v789 = vadd.f32 %v710, %v788
    %v790 = vpop.f32.mrb[0].mxu0
    %791 = vdwg.mxu0
    %792 = vmatprep.subr.mxu0 0.0
    %793 = vmatpush1.msra.mxu0 %v673
    %794 = vmatprep.subr.mxu0 0.0
    %795 = vmatpush1.msra.mxu0 %v674
    %796 = vmatprep.subr.mxu0 0.0
    %797 = vmatpush1.msra.mxu0 %v675
    %798 = vmatprep.subr.mxu0 0.0
    %799 = vmatpush1.msra.mxu0 %v676
    %800 = vmatprep.subr.mxu0 0.0
    %801 = vmatpush1.msra.mxu0 %v677
    %802 = vmatprep.subr.mxu0 0.0
    %803 = vmatpush1.msra.mxu0 %v678
    %804 = vmatprep.subr.mxu0 0.0
    %805 = vmatpush1.msra.mxu0 %v679
    %806 = vmatprep.subr.mxu0 0.0
    %807 = vmatpush1.msra.mxu0 %v680
    %808 = vmatprep.subr.mxu0 0.0
    %809 = vmatpush1.msra.mxu0 %v681
    %810 = vmatprep.subr.mxu0 0.0
    %811 = vmatpush1.msra.mxu0 %v682
    %812 = vmatprep.subr.mxu0 0.0
    %813 = vmatpush1.msra.mxu0 %v683
    %814 = vmatprep.subr.mxu0 0.0
    %815 = vmatpush1.msra.mxu0 %v684
    %816 = vmatprep.subr.mxu0 0.0
    %817 = vmatpush1.msra.mxu0 %v685
    %818 = vmatprep.subr.mxu0 0.0
    %819 = vmatpush1.msra.mxu0 %v686
    %820 = vmatprep.subr.mxu0 0.0
    %821 = vmatpush1.msra.mxu0 %v687
    %822 = vmatprep.subr.mxu0 0.0
    %823 = vmatpush1.msra.mxu0 %v688
    %824 = vmatprep.subr.mxu0 0.0
    %825 = vmatpush1.msra.mxu0 %v689
    %826 = vmatprep.subr.mxu0 0.0
    %827 = vmatpush1.msra.mxu0 %v690
    %828 = vmatprep.subr.mxu0 0.0
    %829 = vmatpush1.msra.mxu0 %v691
    %830 = vmatprep.subr.mxu0 0.0
    %831 = vmatpush1.msra.mxu0 %v692
    %832 = vmatprep.subr.mxu0 0.0
    %833 = vmatpush1.msra.mxu0 %v693
    %834 = vmatprep.subr.mxu0 0.0
    %835 = vmatpush1.msra.mxu0 %v694
    %836 = vmatprep.subr.mxu0 0.0
    %837 = vmatpush1.msra.mxu0 %v695
    %838 = vmatprep.subr.mxu0 0.0
    %839 = vmatpush1.msra.mxu0 %v696
    %840 = vmatprep.subr.mxu0 0.0
    %841 = vmatpush1.msra.mxu0 %v697
    %842 = vmatprep.subr.mxu0 0.0
    %843 = vmatpush1.msra.mxu0 %v698
    %844 = vmatprep.subr.mxu0 0.0
    %845 = vmatpush1.msra.mxu0 %v699
    %846 = vmatprep.subr.mxu0 0.0
    %847 = vmatpush1.msra.mxu0 %v700
    %848 = vmatprep.subr.mxu0 0.0
    %849 = vmatpush1.msra.mxu0 %v701
    %850 = vmatprep.subr.mxu0 0.0
    %851 = vmatpush1.msra.mxu0 %v702
    %852 = vmatprep.subr.mxu0 0.0
    %853 = vmatpush1.msra.mxu0 %v703
    %854 = vmatprep.subr.mxu0 0.0
    %855 = vmatpush1.msra.mxu0 %v704
    %856 = vmatprep.mubr.f32.mxu0 %v632
    %857 = vmatmul.mubr.f32.gmra.mrb[0].mxu0 %v631
    %v858 = vpop.f32.mrb[0].mxu0
    %v859 = vadd.f32 %v779, %v858
    %v860 = vpop.f32.mrb[0].mxu0
    %861 = vmatprep.mubr.f32.mxu0 %v636
    %862 = vmatmul.mubr.f32.gmra.mrb[0].mxu0 %v635
    %v863 = vpop.f32.mrb[0].mxu0
    %v864 = vadd.f32 %v784, %v863
    %v865 = vpop.f32.mrb[0].mxu0
    %866 = vmatprep.mubr.f32.mxu0 %v640
    %867 = vmatmul.mubr.f32.gmra.mrb[0].mxu0 %v639
    %v868 = vpop.f32.mrb[0].mxu0
    %v869 = vadd.f32 %v789, %v868
    %v870 = vpop.f32.mrb[0].mxu0
    %871 = vdwg.mxu0
    %872 = vst [vmem:[#allocation8] sm:$0xff] %v859
    %873 = vst [vmem:[#allocation8 + $0x8] sm:$0xff] %v864
    %874 = vst [vmem:[#allocation8 + $0x10] sm:$0xff] %v869
    // Predicated region
    $region34: #{tpu_custom_call.1} parent=1 // pred_check
      _
    $region35: #{tpu_custom_call.1} parent=1 // pred_check_branch
      %876 = sbr.rel (0) target = $region37
    $region36: #{tpu_custom_call.1} parent=1 // pred_region
      %s878 = ssub.s32 384, 384
      %879 = vsyncadd [#allocation4], %s878
      %s880 = sshll.u32 [#allocation8], 4
      %s881 = int_to_ptr.vmem [resolvable:$true] %s880
      %886 = dma.vmem_to_hbm [thread:$0]  %s881, 384, %s5, [#allocation4], 128, 128, 8
    $region37: #{tpu_custom_call.1} parent=1 // pred_fallthru
      _
    // Predicated region
    $region38: #{tpu_custom_call.1} parent=1 // pred_check
      _
    $region39: #{tpu_custom_call.1} parent=1 // pred_check_branch
      %888 = sbr.rel (0) target = $region41
    $region40: #{tpu_custom_call.1} parent=1 // pred_region
      %889 = dma.done [#allocation4], 384
    $region41: #{tpu_custom_call.1} parent=1 // pred_fallthru
      _
    %890 = vsyncpa [#allocation3], 1
    %891 = vsyncpa [#allocation6], 1
    %892 = vsyncpa [#allocation4], 1

</llo_original>
